<compile_context>
chip_gen: v5e
topology: v5e:2x2
jax: 0.10.0
libtpu: 0.0.40
codegen_flags: <defaults>
</compile_context>

<pallas_src>
import math
import functools

import jax
import jax.numpy as jnp
from jax.experimental import pallas as pl
from jax.experimental.pallas import tpu as pltpu


_VMEM_LIMIT = 48 * 1024 * 1024  # safe on v5e/v6e (128 MiB) and v7x (64 MiB) physical


# ----------------------------- tiling helpers -----------------------------
def _choose_heads_per_block(num_heads, head_dim):
    """Smallest divisor hb of num_heads with (hb*head_dim) % 128 == 0, else all heads."""
    for hb in range(1, num_heads + 1):
        if num_heads % hb == 0 and (hb * head_dim) % 128 == 0:
            return hb
    return num_heads


def _choose_seq_tile(S, max_tile):
    """Largest tile <= max_tile that divides S and is a multiple of 8, else full S."""
    if S <= max_tile:
        return S
    for t in range(max_tile - (max_tile % 8), 7, -8):
        if S % t == 0:
            return t
    return S


# ----------------------------- parameter packing (call ONCE at load time) ---
def pack_attention_params(params, num_attention_heads, compute_dtype=jnp.bfloat16):
    """Pack PyTorch-layout Linear weights into a single fused (H, 3H) matrix.

    PyTorch Linear: y = x @ W^T + b with W of shape (out, in).  The 1/sqrt(d)
    attention scale is folded into the query weight/bias here.
    """
    H = params["wq"].shape[0]
    d = H // num_attention_heads
    scale = 1.0 / math.sqrt(d)
    w_all = jnp.concatenate(
        [params["wq"].T * scale, params["wk"].T, params["wv"].T], axis=1
    ).astype(compute_dtype)                                            # (H, 3H)
    b_all = jnp.concatenate(
        [params["bq"] * scale, params["bk"], params["bv"]]
    )[None, :].astype(jnp.float32)                                     # (1, 3H)
    return {"w_qkv": w_all, "b_qkv": b_all}


# ----------------------------- kernel 1: fused Q/K/V projection -------------
def _qkv_kernel(x_ref, w_ref, b_ref, o_ref, *, g3, dg, compute_dtype):
    # x: (1, ts, H)   w: (H, 3H) bf16, resident   b: (1, 3H) f32
    # o: (1, G3, ts, dg) -- per-head-group column blocks, lane-aligned slices.
    x = x_ref[0].astype(compute_dtype)                     # bf16 MXU operand
    y = jnp.dot(x, w_ref[...], preferred_element_type=jnp.float32)
    y = (y + b_ref[...]).astype(o_ref.dtype)               # (ts, 3H)
    for gi in range(g3):                                   # static, dg-aligned slices
        o_ref[0, gi, :, :] = y[:, gi * dg:(gi + 1) * dg]


def qkv_projection(x, w_qkv, b_qkv, *, dg, compute_dtype):
    """x: (B, S, H); w_qkv: (H, 3H); b_qkv: (1, 3H) -> (B, 3*Gq, S, dg)."""
    B, S, H = x.shape
    H3 = w_qkv.shape[1]
    G3 = H3 // dg
    ts = _choose_seq_tile(S, 512)

    flops = 2 * B * S * H * H3
    bytes_accessed = (B * S * H * x.dtype.itemsize
                      + H * H3 * w_qkv.dtype.itemsize
                      + H3 * 4
                      + B * S * H3 * jnp.dtype(compute_dtype).itemsize)

    return pl.pallas_call(
        functools.partial(_qkv_kernel, g3=G3, dg=dg, compute_dtype=compute_dtype),
        out_shape=jax.ShapeDtypeStruct((B, G3, S, dg), compute_dtype),
        grid_spec=pltpu.PrefetchScalarGridSpec(
            num_scalar_prefetch=0,
            grid=(B, S // ts),
            in_specs=[
                pl.BlockSpec((1, ts, H), lambda b, s: (b, s, 0)),
                pl.BlockSpec((H, H3), lambda b, s: (0, 0)),   # resident weight
                pl.BlockSpec((1, H3), lambda b, s: (0, 0)),   # resident bias
            ],
            out_specs=pl.BlockSpec((1, G3, ts, dg), lambda b, s: (b, 0, s, 0)),
        ),
        compiler_params=pltpu.CompilerParams(
            dimension_semantics=("parallel", "parallel"),
            vmem_limit_bytes=_VMEM_LIMIT),
        cost_estimate=pl.CostEstimate(flops=int(flops), transcendentals=0,
                                      bytes_accessed=int(bytes_accessed)),
    )(x, w_qkv, b_qkv)


# ----------------------------- kernel 2: flash attention ---------------------
def _flash_step(q_ref, k_ref, v_ref, mask_ref, o_ref, m_sc, l_sc, acc_sc, *, hb, d):
    """One online-softmax KV step; returns the masked pre-softmax scores tile."""
    ki = pl.program_id(3)

    @pl.when(ki == 0)
    def _():
        m_sc[...] = jnp.full(m_sc.shape, -jnp.inf, jnp.float32)
        l_sc[...] = jnp.zeros(l_sc.shape, jnp.float32)
        acc_sc[...] = jnp.zeros(acc_sc.shape, jnp.float32)

    q = q_ref[0, 0]                                # (tq, dg) bf16, scale pre-folded
    k = k_ref[0, 0]                                # (tk, dg)
    v = v_ref[0, 0]                                # (tk, dg)
    tq, dg = q.shape
    tk = k.shape[0]
    qh = q.reshape(tq, hb, d)
    kh = k.reshape(tk, hb, d)
    vh = v.reshape(tk, hb, d)

    # bf16 MXU operands, f32 accumulation.
    s = jnp.einsum("qhd,khd->hqk", qh, kh,
                   preferred_element_type=jnp.float32)       # (hb, tq, tk)
    s = s + mask_ref[0, 0]                                   # additive (1, tk) mask

    m_prev = m_sc[...]
    m_new = jnp.maximum(m_prev, jnp.max(s, axis=-1, keepdims=True))
    alpha = jnp.exp(m_prev - m_new)                          # f32 softmax math
    p = jnp.exp(s - m_new)
    l_sc[...] = alpha * l_sc[...] + jnp.sum(p, axis=-1, keepdims=True)
    acc_sc[...] = alpha * acc_sc[...] + jnp.einsum(
        "hqk,khd->hqd", p.astype(v.dtype), vh,
        preferred_element_type=jnp.float32)                  # (hb, tq, d)
    m_sc[...] = m_new

    @pl.when(ki == pl.num_programs(3) - 1)
    def _():
        inv = pl.reciprocal(l_sc[...], approx=True)          # EUP slot
        ctx = (acc_sc[...] * inv).transpose(1, 0, 2).reshape(tq, hb * d)
        o_ref[0, :, :] = ctx.astype(o_ref.dtype)

    return s


def _flash_kernel(q_ref, k_ref, v_ref, mask_ref, o_ref, m_sc, l_sc, acc_sc, *, hb, d):
    _flash_step(q_ref, k_ref, v_ref, mask_ref, o_ref, m_sc, l_sc, acc_sc, hb=hb, d=d)


def _flash_scores_kernel(q_ref, k_ref, v_ref, mask_ref, o_ref, scores_ref,
                         m_sc, l_sc, acc_sc, *, hb, d):
    s = _flash_step(q_ref, k_ref, v_ref, mask_ref, o_ref, m_sc, l_sc, acc_sc, hb=hb, d=d)
    scores_ref[0, :, :, :] = s.astype(scores_ref.dtype)


def attention_core(qkv, attention_mask, out_dtype, *, num_heads, head_dim, hb,
                   output_attentions):
    """qkv: (B, 3*Gq, S, dg); attention_mask: additive (B, 1, 1, S)."""
    B, G3, S, dg = qkv.shape
    Gq = G3 // 3
    H = num_heads * head_dim
    tq = _choose_seq_tile(S, 256)
    tk = _choose_seq_tile(S, 512)
    nq, nk = S // tq, S // tk

    q_spec = pl.BlockSpec((1, 1, tq, dg), lambda b, g, qi, ki: (b, g, qi, 0))
    k_spec = pl.BlockSpec((1, 1, tk, dg), lambda b, g, qi, ki: (b, Gq + g, ki, 0))
    v_spec = pl.BlockSpec((1, 1, tk, dg), lambda b, g, qi, ki: (b, 2 * Gq + g, ki, 0))
    m_spec = pl.BlockSpec((1, 1, 1, tk), lambda b, g, qi, ki: (b, 0, 0, ki))
    # Context written straight into the final (B, S, H) layout at column block g.
    ctx_spec = pl.BlockSpec((1, tq, dg), lambda b, g, qi, ki: (b, qi, g))
    ctx_shape = jax.ShapeDtypeStruct((B, S, H), out_dtype)

    scratch = [pltpu.VMEM((hb, tq, 1), jnp.float32),          # m (running max)
               pltpu.VMEM((hb, tq, 1), jnp.float32),          # l (running denom)
               pltpu.VMEM((hb, tq, head_dim), jnp.float32)]   # acc

    flops = 4 * B * num_heads * S * S * head_dim
    transc = B * num_heads * S * S
    it = qkv.dtype.itemsize
    bytes_accessed = (B * S * H * it                      # Q (read once)
                      + 2 * B * S * H * it * nq           # K/V re-read per q tile
                      + B * S * 4 * Gq * nq               # mask
                      + B * S * H * jnp.dtype(out_dtype).itemsize)

    cparams = pltpu.CompilerParams(
        dimension_semantics=("parallel", "parallel", "parallel", "arbitrary"),
        vmem_limit_bytes=_VMEM_LIMIT)
    grid_args = dict(num_scalar_prefetch=0, grid=(B, Gq, nq, nk),
                     scratch_shapes=scratch)

    if output_attentions:
        scores_spec = pl.BlockSpec((1, hb, tq, tk), lambda b, g, qi, ki: (b, g, qi, ki))
        ctx, scores = pl.pallas_call(
            functools.partial(_flash_scores_kernel, hb=hb, d=head_dim),
            out_shape=(ctx_shape,
                       jax.ShapeDtypeStruct((B, num_heads, S, S), jnp.float32)),
            grid_spec=pltpu.PrefetchScalarGridSpec(
                in_specs=[q_spec, k_spec, v_spec, m_spec],
                out_specs=[ctx_spec, scores_spec], **grid_args),
            compiler_params=cparams,
            cost_estimate=pl.CostEstimate(
                flops=int(flops), transcendentals=int(transc),
                bytes_accessed=int(bytes_accessed + B * num_heads * S * S * 4)),
        )(qkv, qkv, qkv, attention_mask)
        return ctx, scores

    ctx = pl.pallas_call(
        functools.partial(_flash_kernel, hb=hb, d=head_dim),
        out_shape=ctx_shape,
        grid_spec=pltpu.PrefetchScalarGridSpec(
            in_specs=[q_spec, k_spec, v_spec, m_spec],
            out_specs=ctx_spec, **grid_args),
        compiler_params=cparams,
        cost_estimate=pl.CostEstimate(flops=int(flops), transcendentals=int(transc),
                                      bytes_accessed=int(bytes_accessed)),
    )(qkv, qkv, qkv, attention_mask)
    return ctx, None


# ----------------------------- module wrapper -----------------------------
def roberta_self_attention(hidden_states, attention_mask, packed_params,
                           num_attention_heads, output_attentions=False):
    B, S, H = hidden_states.shape
    head_dim = H // num_attention_heads
    hb = _choose_heads_per_block(num_attention_heads, head_dim)
    dg = hb * head_dim
    compute_dtype = packed_params["w_qkv"].dtype

    if attention_mask is None:
        attention_mask = jnp.zeros((B, 1, 1, S), jnp.float32)
    attention_mask = attention_mask.astype(jnp.float32)

    # Kernel 1: fused Q/K/V projection, head-group layout, bf16 intermediate.
    qkv = qkv_projection(hidden_states, packed_params["w_qkv"], packed_params["b_qkv"],
                         dg=dg, compute_dtype=compute_dtype)

    # Kernel 2: flash-style scaled dot-product attention, ctx in (B, S, H) layout.
    ctx, scores = attention_core(qkv, attention_mask, hidden_states.dtype,
                                 num_heads=num_attention_heads, head_dim=head_dim,
                                 hb=hb, output_attentions=output_attentions)
    if output_attentions:
        return ctx, scores
    return (ctx,)


# ----------------------------- reference (plain JAX, f32) -------------------
def reference(hidden_states, attention_mask, params, num_attention_heads):
    B, S, H = hidden_states.shape
    d = H // num_attention_heads
    q = hidden_states @ params["wq"].T + params["bq"]
    k = hidden_states @ params["wk"].T + params["bk"]
    v = hidden_states @ params["wv"].T + params["bv"]
    sh = lambda x: x.reshape(B, S, num_attention_heads, d).transpose(0, 2, 1, 3)
    ql, kl, vl = sh(q), sh(k), sh(v)
    scores = jnp.einsum("bhqd,bhkd->bhqk", ql, kl) / math.sqrt(d)
    scores = scores + attention_mask
    probs = jax.nn.softmax(scores, axis=-1)
    ctx = jnp.einsum("bhqk,bhkd->bhqd", probs, vl)
    return ctx.transpose(0, 2, 1, 3).reshape(B, S, H), scores


if __name__ == "__main__":
    # Config: batch=2, seq=8, hidden=32, heads=4 (head_dim=8)
    B, S, H, nH = 2, 8, 32, 4

    key = jax.random.PRNGKey(0)
    ks = jax.random.split(key, 8)
    scale = 0.02
    params = {
        "wq": scale * jax.random.normal(ks[0], (H, H), jnp.float32),
        "bq": scale * jax.random.normal(ks[1], (H,), jnp.float32),
        "wk": scale * jax.random.normal(ks[2], (H, H), jnp.float32),
        "bk": scale * jax.random.normal(ks[3], (H,), jnp.float32),
        "wv": scale * jax.random.normal(ks[4], (H, H), jnp.float32),
        "bv": scale * jax.random.normal(ks[5], (H,), jnp.float32),
    }
    hidden_states = jax.random.normal(ks[6], (B, S, H), jnp.float32)

    # HF-style additive attention mask: 0 for keep, -10000 for masked positions.
    key_mask = (jax.random.uniform(ks[7], (B, S)) > 0.2).astype(jnp.float32)
    attention_mask = (1.0 - key_mask)[:, None, None, :] * -10000.0  # (B, 1, 1, S)

    # Pack weights ONCE (transpose / scale fold / bf16 cast hoisted out of forward).
    packed = pack_attention_params(params, nH, compute_dtype=jnp.bfloat16)

    # Fast path: no attention-scores writeback.
    (ctx_only,) = roberta_self_attention(hidden_states, attention_mask, packed, nH,
                                         output_attentions=False)
    ctx_only = jax.block_until_ready(ctx_only)

    # output_attentions=True path (module returns pre-softmax attention_scores).
    ctx2, scores2 = roberta_self_attention(hidden_states, attention_mask, packed, nH,
                                           output_attentions=True)
    ctx2, scores2 = jax.block_until_ready((ctx2, scores2))

    ref_ctx, ref_scores = reference(hidden_states, attention_mask, params, nH)

    assert ctx_only.shape == (B, S, H)
    assert scores2.shape == (B, nH, S, S)
    # bf16 MXU operands + approx reciprocal -> slightly looser tolerance than f32 path.
    assert jnp.allclose(ctx_only, ref_ctx, atol=5e-3, rtol=1e-2), "ctx mismatch (fast path)"
    assert jnp.allclose(ctx2, ref_ctx, atol=5e-3, rtol=1e-2), "ctx mismatch (scores path)"
    assert jnp.allclose(scores2, ref_scores, atol=5e-3, rtol=1e-2), "scores mismatch"

    print("KERNEL_OK")
</pallas_src>

<mosaic_0001>
module attributes {stable_mosaic.version = 11 : i64} {
  func.func @_qkv_kernel(%arg0: i32, %arg1: i32, %arg2: memref<1x8x32xf32, #tpu.memory_space<vmem>>, %arg3: memref<32x96xbf16, #tpu.memory_space<vmem>>, %arg4: memref<1x96xf32, #tpu.memory_space<vmem>>, %arg5: memref<1x3x8x32xbf16, #tpu.memory_space<vmem>>) attributes {dimension_semantics = [#tpu.dimension_semantics<parallel>, #tpu.dimension_semantics<parallel>], iteration_bounds = array<i64: 2, 1>, scalar_prefetch = 0 : i64, scratch_operands = 0 : i64, tpu.core_type = #tpu.core_type<tc>, window_params = [{transform_indices = @transform_0, window_bounds = array<i64: 1, 8, 32>}, {pipeline_mode = #tpu.pipeline_mode<synchronous>, transform_indices = @transform_1, window_bounds = array<i64: 32, 96>}, {pipeline_mode = #tpu.pipeline_mode<synchronous>, transform_indices = @transform_2, window_bounds = array<i64: 1, 96>}, {transform_indices = @transform_3, window_bounds = array<i64: 1, 3, 8, 32>}]} {
    %c0 = arith.constant 0 : index
    %c0_0 = arith.constant 0 : index
    %c0_1 = arith.constant 0 : index
    %0 = vector.load %arg2[%c0, %c0_0, %c0_1] : memref<1x8x32xf32, #tpu.memory_space<vmem>>, vector<1x8x32xf32>
    %1 = vector.shape_cast %0 : vector<1x8x32xf32> to vector<8x32xf32>
    %2 = arith.truncf %1 : vector<8x32xf32> to vector<8x32xbf16>
    %c0_2 = arith.constant 0 : index
    %c0_3 = arith.constant 0 : index
    %3 = vector.load %arg3[%c0_2, %c0_3] : memref<32x96xbf16, #tpu.memory_space<vmem>>, vector<32x96xbf16>
    %cst = arith.constant dense<0.000000e+00> : vector<8x96xf32>
    %4 = tpu.matmul %2, %3, %cst {dimension_numbers = #tpu.dot_dimension_numbers<[1], [0], [0], [1], [0, 0, 1, 1], [], []>} : vector<8x32xbf16>, vector<32x96xbf16>, vector<8x96xf32> -> vector<8x96xf32>
    %c0_4 = arith.constant 0 : index
    %c0_5 = arith.constant 0 : index
    %5 = vector.load %arg4[%c0_4, %c0_5] : memref<1x96xf32, #tpu.memory_space<vmem>>, vector<1x96xf32>
    %6 = vector.broadcast %5 : vector<1x96xf32> to vector<8x96xf32>
    %7 = arith.addf %4, %6 : vector<8x96xf32>
    %8 = arith.truncf %7 : vector<8x96xf32> to vector<8x96xbf16>
    %9 = vector.extract_strided_slice %8 {offsets = [0, 0], sizes = [8, 32], strides = [1, 1]} : vector<8x96xbf16> to vector<8x32xbf16>
    %c0_6 = arith.constant 0 : index
    %c0_7 = arith.constant 0 : index
    %c0_8 = arith.constant 0 : index
    %c0_9 = arith.constant 0 : index
    %10 = vector.load %arg5[%c0_6, %c0_7, %c0_8, %c0_9] : memref<1x3x8x32xbf16, #tpu.memory_space<vmem>>, vector<1x1x8x32xbf16>
    %11 = vector.shape_cast %10 : vector<1x1x8x32xbf16> to vector<8x32xbf16>
    %12 = vector.shape_cast %9 : vector<8x32xbf16> to vector<1x1x8x32xbf16>
    tpu.vector_store %arg5[%c0_6, %c0_7, %c0_8, %c0_9], %12 {strides = array<i32>} : memref<1x3x8x32xbf16, #tpu.memory_space<vmem>>, vector<1x1x8x32xbf16>,
    %13 = vector.extract_strided_slice %8 {offsets = [0, 32], sizes = [8, 32], strides = [1, 1]} : vector<8x96xbf16> to vector<8x32xbf16>
    %c0_10 = arith.constant 0 : index
    %c1 = arith.constant 1 : index
    %c0_11 = arith.constant 0 : index
    %c0_12 = arith.constant 0 : index
    %14 = vector.load %arg5[%c0_10, %c1, %c0_11, %c0_12] : memref<1x3x8x32xbf16, #tpu.memory_space<vmem>>, vector<1x1x8x32xbf16>
    %15 = vector.shape_cast %14 : vector<1x1x8x32xbf16> to vector<8x32xbf16>
    %16 = vector.shape_cast %13 : vector<8x32xbf16> to vector<1x1x8x32xbf16>
    tpu.vector_store %arg5[%c0_10, %c1, %c0_11, %c0_12], %16 {strides = array<i32>} : memref<1x3x8x32xbf16, #tpu.memory_space<vmem>>, vector<1x1x8x32xbf16>,
    %17 = vector.extract_strided_slice %8 {offsets = [0, 64], sizes = [8, 32], strides = [1, 1]} : vector<8x96xbf16> to vector<8x32xbf16>
    %c0_13 = arith.constant 0 : index
    %c2 = arith.constant 2 : index
    %c0_14 = arith.constant 0 : index
    %c0_15 = arith.constant 0 : index
    %18 = vector.load %arg5[%c0_13, %c2, %c0_14, %c0_15] : memref<1x3x8x32xbf16, #tpu.memory_space<vmem>>, vector<1x1x8x32xbf16>
    %19 = vector.shape_cast %18 : vector<1x1x8x32xbf16> to vector<8x32xbf16>
    %20 = vector.shape_cast %17 : vector<8x32xbf16> to vector<1x1x8x32xbf16>
    tpu.vector_store %arg5[%c0_13, %c2, %c0_14, %c0_15], %20 {strides = array<i32>} : memref<1x3x8x32xbf16, #tpu.memory_space<vmem>>, vector<1x1x8x32xbf16>,
    return
  }
  func.func @transform_0(%arg0: i32, %arg1: i32) -> (i32, i32, i32) {
    %c0_i32 = arith.constant 0 : i32
    %c0_i32_0 = arith.constant 0 : i32
    return %arg0, %arg1, %c0_i32 : i32, i32, i32
  }
  func.func @transform_1(%arg0: i32, %arg1: i32) -> (i32, i32) {
    %c0_i32 = arith.constant 0 : i32
    %c0_i32_0 = arith.constant 0 : i32
    %c0_i32_1 = arith.constant 0 : i32
    return %c0_i32, %c0_i32_0 : i32, i32
  }
  func.func @transform_2(%arg0: i32, %arg1: i32) -> (i32, i32) {
    %c0_i32 = arith.constant 0 : i32
    %c0_i32_0 = arith.constant 0 : i32
    %c0_i32_1 = arith.constant 0 : i32
    return %c0_i32, %c0_i32_0 : i32, i32
  }
  func.func @transform_3(%arg0: i32, %arg1: i32) -> (i32, i32, i32, i32) {
    %c0_i32 = arith.constant 0 : i32
    %c0_i32_0 = arith.constant 0 : i32
    %c0_i32_1 = arith.constant 0 : i32
    return %arg0, %c0_i32, %arg1, %c0_i32_0 : i32, i32, i32, i32
  }
}

</mosaic_0001>

<llo_original>
// kernel: tpu_custom_call.1
$region0: #{tpu_custom_call.1}
  #allocation0 [shape = 'u32[]', space=smem, size = 0x4, offset = 0x4, fixed_abs, tag = 'smem constant byte address 0x4 - core index']
  #allocation1 [shape = 'u32[72,128]{1,0:T(1,128)}', space=vmem, size = 0x9000, scoped, tag = 'internal scratch']
  %s0 = inlined_call_operand.hbm [shape: f32[2,8,32], index: 0, kind: input, shape index: {}]
  %s1 = inlined_call_operand.hbm [shape: bf16[32,96], index: 1, kind: input, shape index: {}]
  %s2 = inlined_call_operand.vmem [shape: f32[1,96], index: 2, kind: input, shape index: {}]
  %s3 = inlined_call_operand.hbm [shape: bf16[2,3,8,32], index: 3, kind: output, shape index: {}]
  %s4 = sld [smem:[#allocation0]]
  $region53: #{tpu_custom_call.1} parent=0
    _
  %s6 = ssub.s32 1, %s4
  %s7 = scalar_select 0, %s6, %s4
  $region1: #{tpu_custom_call.1} parent=0
    #allocation2 [shape = 'u8[8192]{0}', space=vmem, size = 0x2000, scoped, tag = 'input window, operand 0']
    #allocation3 [shape = 's32[2]{0}', space=sflag, size = 0x8, scoped, tag = 'scoped memory for tpu_custom_call.1']
    #allocation4 [shape = 's32[2]{0}', space=sflag, size = 0x8, scoped, tag = 'scoped memory for tpu_custom_call.1']
    #allocation5 [shape = 'u8[8192]{0}', space=vmem, size = 0x2000, scoped, tag = 'input window, operand 1, single buffered']
    #allocation6 [shape = 's32[1]{0}', space=sflag, size = 0x4, scoped, tag = 'scoped memory for tpu_custom_call.1']
    #allocation7 [shape = 'u8[12288]{0}', space=vmem, size = 0x3000, scoped, tag = 'output window, operand 0']
    %8 = vsyncpa [#allocation3], 0
    %s9 = scalar_lea.sflag [#allocation3], 1
    %10 = vsyncpa %s9, 0
    %11 = vsyncpa [#allocation6], 0
    %12 = vsyncpa [#allocation4], 0
    %s13 = scalar_lea.sflag [#allocation4], 1
    %14 = vsyncpa %s13, 0
    loop: start=0, step=1, limit=4
    $region2: #{tpu_custom_call.1} parent=1 // loop_pre_header
      _
    $region3: #{tpu_custom_call.1} parent=1 // loop_header
      %s16 = sphi 0, %s20
      %p17 = scmp.ge.s32.totalorder %s16, 4
      %s23 = sphi 0, %s35
      %s24 = sphi 0, %s31
      %s25 = sphi 0, %s23
      %s26 = sphi 0, %s24
      %s27 = sphi 0, %s25
      %s28 = sphi 0, %s26
      %s40 = sphi 0, %s42
      %s43 = sphi 0, %s40
      %s44 = sphi 0, %s43
      %s60 = sphi 0, %s44
      %s64 = sphi 0, %s64
      %s66 = sphi 0, %s64
      %s67 = sphi 0, %s66
      %s81 = sphi 0, %s67
      %s85 = sphi 0, %s85
      %s87 = sphi 0, %s85
      %s88 = sphi 0, %s87
      %s102 = sphi 0, %s88
      %s110 = sphi 0, %s112
      %s113 = sphi 0, %s110
      %s114 = sphi 0, %s113
      %s130 = sphi 0, %s114
    $region4: #{tpu_custom_call.1} parent=1 // loop_header_branch
      %19 = sbr.rel (%p17) target = $region8
    $region5: #{tpu_custom_call.1} parent=1 // loop_body
      %s21 = ssub.s32 %s16, 1
      %s22 = ssub.s32 %s16, 2
      %s29 = sadd.s32 1, %s24
      %p30 = scmp.ge.s32.totalorder %s29, 1
      %s31 = scalar_select %p30, 0, %s29
      %s32 = sadd.s32 1, %s23
      %s33 = scalar_select %p30, %s32, %s23
      %p34 = scmp.ge.s32.totalorder %s33, 2
      %s35 = scalar_select %p34, 0, %s33
      %s36 = ssub.s32 %s23, %s35
      %s37 = ssub.s32 %s24, %s31
      %s38 = sor.u32 %s36, %s37
      %p39 = scmp.eq.s32.totalorder %s38, 0
      %s41 = sadd.s32 %s40, 1
      %s42 = scalar_select %p39, %s40, %s41
      %p45 = pneg %p39
      %p46 = scmp.eq.s32.totalorder %s16, 1
      %p47 = por %p45, %p46
      %p48 = scmp.ne.s32.totalorder %s40, %s43
      %p49 = scmp.eq.s32.totalorder %s16, 0
      %p50 = por %p48, %p49
      %p51 = scmp.ne.s32.totalorder %s40, %s43
      %p52 = scmp.eq.s32.totalorder %s21, 1
      %p53 = por %p51, %p52
      %p54 = scmp.ne.s32.totalorder %s43, %s44
      %p55 = scmp.eq.s32.totalorder %s21, 0
      %p56 = por %p54, %p55
      %p57 = scmp.ne.s32.totalorder %s43, %s44
      %p58 = scmp.eq.s32.totalorder %s22, 1
      %p59 = por %p57, %p58
      %p61 = scmp.ne.s32.totalorder %s44, %s60
      %p62 = scmp.eq.s32.totalorder %s22, 0
      %p63 = por %p61, %p62
      %s65 = sadd.s32 %s64, 1
      %p68 = scmp.eq.s32.totalorder %s16, 1
      %p69 = scmp.ne.s32.totalorder %s64, %s66
      %p70 = scmp.eq.s32.totalorder %s16, 0
      %p71 = por %p69, %p70
      %p72 = scmp.ne.s32.totalorder %s64, %s66
      %p73 = scmp.eq.s32.totalorder %s21, 1
      %p74 = por %p72, %p73
      %p75 = scmp.ne.s32.totalorder %s66, %s67
      %p76 = scmp.eq.s32.totalorder %s21, 0
      %p77 = por %p75, %p76
      %p78 = scmp.ne.s32.totalorder %s66, %s67
      %p79 = scmp.eq.s32.totalorder %s22, 1
      %p80 = por %p78, %p79
      %p82 = scmp.ne.s32.totalorder %s67, %s81
      %p83 = scmp.eq.s32.totalorder %s22, 0
      %p84 = por %p82, %p83
      %s86 = sadd.s32 %s85, 1
      %p89 = scmp.eq.s32.totalorder %s16, 1
      %p90 = scmp.ne.s32.totalorder %s85, %s87
      %p91 = scmp.eq.s32.totalorder %s16, 0
      %p92 = por %p90, %p91
      %p93 = scmp.ne.s32.totalorder %s85, %s87
      %p94 = scmp.eq.s32.totalorder %s21, 1
      %p95 = por %p93, %p94
      %p96 = scmp.ne.s32.totalorder %s87, %s88
      %p97 = scmp.eq.s32.totalorder %s21, 0
      %p98 = por %p96, %p97
      %p99 = scmp.ne.s32.totalorder %s87, %s88
      %p100 = scmp.eq.s32.totalorder %s22, 1
      %p101 = por %p99, %p100
      %p103 = scmp.ne.s32.totalorder %s88, %s102
      %p104 = scmp.eq.s32.totalorder %s22, 0
      %p105 = por %p103, %p104
      %s106 = ssub.s32 %s23, %s35
      %s107 = ssub.s32 %s24, %s31
      %s108 = sor.u32 %s106, %s107
      %p109 = scmp.eq.s32.totalorder %s108, 0
      %s111 = sadd.s32 %s110, 1
      %s112 = scalar_select %p109, %s110, %s111
      %p115 = pneg %p109
      %p116 = scmp.eq.s32.totalorder %s16, 1
      %p117 = por %p115, %p116
      %p118 = scmp.ne.s32.totalorder %s110, %s113
      %p119 = scmp.eq.s32.totalorder %s16, 0
      %p120 = por %p118, %p119
      %p121 = scmp.ne.s32.totalorder %s110, %s113
      %p122 = scmp.eq.s32.totalorder %s21, 1
      %p123 = por %p121, %p122
      %p124 = scmp.ne.s32.totalorder %s113, %s114
      %p125 = scmp.eq.s32.totalorder %s21, 0
      %p126 = por %p124, %p125
      %p127 = scmp.ne.s32.totalorder %s113, %s114
      %p128 = scmp.eq.s32.totalorder %s22, 1
      %p129 = por %p127, %p128
      %p131 = scmp.ne.s32.totalorder %s114, %s130
      %p132 = scmp.eq.s32.totalorder %s22, 0
      %p133 = por %p131, %p132
      %p134 = scmp.le.s32.totalorder 1, %s16
      %p135 = scmp.lt.s32.totalorder %s16, 3
      %p136 = pnand %p134, %p135
      %p137 = pneg %p136
      // Predicated region
      $region9: #{tpu_custom_call.1} parent=5 // pred_check
        _
      $region10: #{tpu_custom_call.1} parent=5 // pred_check_branch
        %139 = sbr.rel (%p136) target = $region12
      $region11: #{tpu_custom_call.1} parent=5 // pred_region
        %s140 = ssub.s32 %s16, 1
        // Predicated region
        $region13: #{tpu_custom_call.1} parent=11 // pred_check
          %p141 = pneg %p77
        $region14: #{tpu_custom_call.1} parent=11 // pred_check_branch
          %143 = sbr.rel (%p141) target = $region16
        $region15: #{tpu_custom_call.1} parent=11 // pred_region
          %145 = vsyncadd [#allocation6], 0
          %s146 = sshll.u32 %s1, 4
          %s147 = int_to_ptr.hbm [resolvable:$true] %s146
          %s148 = sshll.u32 [#allocation5], 4
          %s149 = int_to_ptr.vmem [resolvable:$true] %s148
          %154 = dma.hbm_to_vmem [thread:$0]  %s147, 256, %s149, [#allocation6], 64, 64, 4
        $region16: #{tpu_custom_call.1} parent=11 // pred_fallthru
          _
        // Predicated region
        $region17: #{tpu_custom_call.1} parent=11 // pred_check
          %p155 = pneg %p98
        $region18: #{tpu_custom_call.1} parent=11 // pred_check_branch
          %157 = sbr.rel (%p155) target = $region20
        $region19: #{tpu_custom_call.1} parent=11 // pred_region
          _
        $region20: #{tpu_custom_call.1} parent=11 // pred_fallthru
          _
      $region12: #{tpu_custom_call.1} parent=5 // pred_fallthru
        _
      %p158 = scmp.lt.s32.totalorder %s16, 2
      // Predicated region
      $region21: #{tpu_custom_call.1} parent=5 // pred_check
        %p159 = pneg %p158
      $region22: #{tpu_custom_call.1} parent=5 // pred_check_branch
        %161 = sbr.rel (%p159) target = $region24
      $region23: #{tpu_custom_call.1} parent=5 // pred_region
        // Predicated region
        $region25: #{tpu_custom_call.1} parent=23 // pred_check
          %p162 = pneg %p50
        $region26: #{tpu_custom_call.1} parent=23 // pred_check_branch
          %164 = sbr.rel (%p162) target = $region28
        $region27: #{tpu_custom_call.1} parent=23 // pred_region
          %s165 = sand.u32 %s40, 1
          %s166 = scalar_lea.sflag [#allocation3], %s165
          %s167 = sand.u32 %s40, 1
          %s168 = smul.addr %s167, 8
          %s169 = scalar_lea.vmem [#allocation2], %s168
          %171 = vsyncadd %s166, 0
          %s172 = sadd.s32 %s24, %s23
          %s173 = smul.addr %s172, 8
          %s174 = scalar_lea.hbm %s0, %s173
          %s176 = sshll.u32 %s174, 4
          %s177 = int_to_ptr.hbm [resolvable:$true] %s176
          %s178 = sshll.u32 %s169, 4
          %s179 = int_to_ptr.vmem [resolvable:$true] %s178
          %181 = dma.hbm_to_vmem [thread:$0]  %s177, 128, %s179, %s166
        $region28: #{tpu_custom_call.1} parent=23 // pred_fallthru
          _
      $region24: #{tpu_custom_call.1} parent=5 // pred_fallthru
        _
      %p182 = scmp.le.s32.totalorder 1, %s16
      %p183 = scmp.lt.s32.totalorder %s16, 3
      %p184 = pnand %p182, %p183
      %p185 = pneg %p184
      // Predicated region
      $region29: #{tpu_custom_call.1} parent=5 // pred_check
        _
      $region30: #{tpu_custom_call.1} parent=5 // pred_check_branch
        %187 = sbr.rel (%p184) target = $region32
      $region31: #{tpu_custom_call.1} parent=5 // pred_region
        %s188 = ssub.s32 %s16, 1
        %s189 = sand.u32 %s43, 1
        %s190 = scalar_lea.sflag [#allocation3], %s189
        %s191 = sand.u32 %s43, 1
        %s192 = smul.addr %s191, 8
        %s193 = scalar_lea.vmem [#allocation2], %s192
        // Predicated region
        $region33: #{tpu_custom_call.1} parent=31 // pred_check
          %p194 = pneg %p56
        $region34: #{tpu_custom_call.1} parent=31 // pred_check_branch
          %196 = sbr.rel (%p194) target = $region36
        $region35: #{tpu_custom_call.1} parent=31 // pred_region
          %198 = dma.done %s190, 128
        $region36: #{tpu_custom_call.1} parent=31 // pred_fallthru
          _
        // Predicated region
        $region37: #{tpu_custom_call.1} parent=31 // pred_check
          %p199 = pneg %p77
        $region38: #{tpu_custom_call.1} parent=31 // pred_check_branch
          %201 = sbr.rel (%p199) target = $region40
        $region39: #{tpu_custom_call.1} parent=31 // pred_region
          %203 = dma.done [#allocation6], 256
        $region40: #{tpu_custom_call.1} parent=31 // pred_fallthru
          _
        %s204 = sand.u32 %s43, 1
        %s205 = scalar_lea.sflag [#allocation3], %s204
        %s206 = sand.u32 %s43, 1
        %s207 = smul.addr %s206, 8
        %s208 = scalar_lea.vmem [#allocation2], %s207
        %p209 = pneg %p56
        %p210 = pneg %p53
        %p211 = pneg %p77
        %p212 = pneg %p74
        %p213 = pneg %p98
        %p214 = pneg %p95
        %p215 = pneg %p126
        %p216 = pneg %p123
        %s217 = sand.u32 %s113, 1
        %s218 = scalar_lea.sflag [#allocation4], %s217
        %s219 = sand.u32 %s113, 1
        %s220 = smul.addr %s219, 12
        %s221 = scalar_lea.vmem [#allocation7], %s220
        %v223 = vld [vmem:[%s193] sm:$0xff]
        %v224 = vpack.c.bf16 %v223, %v223
        %v225 = vld [vmem:[#allocation5] sm:$0xf]
        %v226 = vld [vmem:[#allocation5 + $0x4] sm:$0xf]
        %v227 = vld [vmem:[#allocation5 + $0x8] sm:$0xf]
        %v228 = vld [vmem:[#allocation5 + $0xc] sm:$0xf]
        %v229 = vld [vmem:[%s2] sm:$0x1]
        %v231 = vperm.slane %v229, 0
        %v237 = vunpack.c.l.b16 %v225
        %v238 = vunpack.c.l.b16 %v226
        %v239 = vunpack.c.l.b16 %v227
        %v240 = vunpack.c.l.b16 %v228
        %v241 = vpack.c.b16 %v238, %v237
        %v242 = vpack.c.b16 %v240, %v239
        %vm245 = vcmask 261120
        %v247 = vsel %vm245, %v224, 0
        %249 = vmatpush.bf16.msra.mxu0 0
        %250 = vmatpush.bf16.msra.mxu0 0
        %251 = vmatpush.bf16.msra.mxu0 0
        %252 = vmatpush.bf16.msra.mxu0 0
        %253 = vmatpush.bf16.msra.mxu0 0
        %254 = vmatpush.bf16.msra.mxu0 0
        %255 = vmatpush.bf16.msra.mxu0 %v242
        %256 = vmatpush.bf16.msra.mxu0 %v241
        %257 = vmatmul.bf16.gmra.mxu0 %v247
        %v258 = vpop.f32.mrf.mxu0
        %v259 = vadd.f32 %v231, %v258
        %v260 = vpop.f32.mrf.mxu0
        %261 = vdwg.mxu0
        %v262 = vpack.c.bf16 %v259, %v259
        %vm263 = vcmask 257024
        %264 = vst.msk [vmem:[%s221] sm:$0xf] %vm263, %v262
        %266 = vrot.lane.b32.xlu0 %v262, 96
        %v267 = vpop.permute.xlu0 %266
        %s269 = scalar_lea.vmem %s221, 4 [#allocation7]
        %270 = vst.msk [vmem:[%s269] sm:$0xf] %vm263, %v267
        %271 = vrot.lane.b32.xlu0 %v262, 64
        %v272 = vpop.permute.xlu0 %271
        %s274 = scalar_lea.vmem %s221, 8 [#allocation7]
        %275 = vst.msk [vmem:[%s274] sm:$0xf] %vm263, %v272
        %s276 = sand.u32 %s113, 1
        %s277 = scalar_lea.sflag [#allocation4], %s276
        %s278 = sand.u32 %s113, 1
        %s279 = smul.addr %s278, 12
        %s280 = scalar_lea.vmem [#allocation7], %s279
        // Predicated region
        $region41: #{tpu_custom_call.1} parent=31 // pred_check
          %p281 = pneg %p123
        $region42: #{tpu_custom_call.1} parent=31 // pred_check_branch
          %283 = sbr.rel (%p281) target = $region44
        $region43: #{tpu_custom_call.1} parent=31 // pred_region
          %285 = vsyncadd %s277, 0
          %s286 = smul.addr %s25, 3
          %s287 = sadd.s32 %s26, %s286
          %s288 = smul.addr %s287, 4
          %s289 = scalar_lea.hbm %s3, %s288
          %s290 = sshll.u32 %s280, 4
          %s291 = int_to_ptr.vmem [resolvable:$true] %s290
          %s292 = sshll.u32 %s289, 4
          %s293 = int_to_ptr.hbm [resolvable:$true] %s292
          %298 = dma.vmem_to_hbm [thread:$0]  %s291, 192, %s293, %s277, 64, 64, 4
        $region44: #{tpu_custom_call.1} parent=31 // pred_fallthru
          _
      $region32: #{tpu_custom_call.1} parent=5 // pred_fallthru
        _
      %p299 = scmp.le.s32.totalorder 2, %s16
      // Predicated region
      $region45: #{tpu_custom_call.1} parent=5 // pred_check
        %p300 = pneg %p299
      $region46: #{tpu_custom_call.1} parent=5 // pred_check_branch
        %302 = sbr.rel (%p300) target = $region48
      $region47: #{tpu_custom_call.1} parent=5 // pred_region
        %s303 = ssub.s32 %s16, 2
        // Predicated region
        $region49: #{tpu_custom_call.1} parent=47 // pred_check
          %p304 = pneg %p129
        $region50: #{tpu_custom_call.1} parent=47 // pred_check_branch
          %306 = sbr.rel (%p304) target = $region52
        $region51: #{tpu_custom_call.1} parent=47 // pred_region
          %s307 = sand.u32 %s114, 1
          %s308 = scalar_lea.sflag [#allocation4], %s307
          %s309 = sand.u32 %s114, 1
          %s310 = smul.addr %s309, 12
          %s311 = scalar_lea.vmem [#allocation7], %s310
          %313 = dma.done %s308, 192
        $region52: #{tpu_custom_call.1} parent=47 // pred_fallthru
          _
      $region48: #{tpu_custom_call.1} parent=5 // pred_fallthru
        _
    $region6: #{tpu_custom_call.1} parent=1 // loop_footer
      %s20 = sadd.s32 1, %s16
    $region7: #{tpu_custom_call.1} parent=1 // loop_footer_branch
      %15 = sbr.rel target = $region3
    $region8: #{tpu_custom_call.1} parent=1 // loop_exit
      _
    %314 = vsyncpa [#allocation3], 1
    %s315 = scalar_lea.sflag [#allocation3], 1
    %316 = vsyncpa %s315, 1
    %317 = vsyncpa [#allocation6], 1
    %318 = vsyncpa [#allocation4], 1
    %s319 = scalar_lea.sflag [#allocation4], 1
    %320 = vsyncpa %s319, 1

</llo_original>
